<compile_context>
chip_gen: v6e
topology: v6e:2x2x1
jax: 0.10.0
libtpu: 0.0.40
codegen_flags: <defaults>
</compile_context>

<pallas_src>
import math

import jax
import jax.numpy as jnp
from jax.experimental import pallas as pl
from jax.experimental.pallas import tpu as pltpu


def _periodic_kernel(x_ref, w2_ref, ph_ref, out_ref):
    # x_ref:   (bt, F)       input features for this batch tile (native dtype)
    # w2_ref:  (F, 2K) f32   2*pi * [freq | freq]
    # ph_ref:  (F, 2K) f32   [0 | -pi/2] phase so cos covers both halves
    # out_ref: (bt, F, 2K)   cos(angle + phase) == [cos(angle) | sin(angle)]
    x = x_ref[...].astype(jnp.float32)                      # (bt, F)
    angle = x[:, :, None] * w2_ref[...][None, :, :] + ph_ref[...][None, :, :]
    out_ref[...] = jnp.cos(angle).astype(out_ref.dtype)     # single lane-dense store


def periodic_embeddings(x, frequencies, *, batch_tile=1024, out_dtype=None):
    """Pallas equivalent of PeriodicEmbeddings(...).forward(x)."""
    assert x.ndim == 2, "x must be (batch, n_features)"
    B, F = x.shape
    Fw, K = frequencies.shape
    assert Fw == F, "frequencies first dim must match n_features"
    two_k = 2 * K
    out_dtype = x.dtype if out_dtype is None else out_dtype

    # Tiny constant operands, built once in the wrapper (f32 math in-kernel).
    freq32 = frequencies.astype(jnp.float32)
    w2 = (2.0 * math.pi) * jnp.concatenate([freq32, freq32], axis=-1)        # (F, 2K)
    ph = jnp.concatenate(
        [jnp.zeros((F, K), jnp.float32),
         jnp.full((F, K), -0.5 * math.pi, jnp.float32)], axis=-1)            # (F, 2K)

    # --- batch tile sizing -------------------------------------------------
    out_itemsize = jnp.dtype(out_dtype).itemsize
    x_itemsize = jnp.dtype(x.dtype).itemsize
    row_out_bytes = F * two_k * out_itemsize
    # Cap one output block at ~4 MiB so double-buffered output + f32
    # intermediates stay well inside scoped VMEM on v5e/v6e/v7x.
    max_tile = max(8, (4 * 1024 * 1024) // max(row_out_bytes, 1))
    bt = int(min(batch_tile, max_tile))
    bt = max(8, (bt // 8) * 8)                         # sublane-aligned
    bt = min(bt, max(8, ((B + 7) // 8) * 8))           # don't exceed the batch

    # v7x megacore: make sure there are >= 2 grid steps when the batch allows.
    if pl.cdiv(B, bt) == 1 and B > 8:
        bt = max(8, ((pl.cdiv(B, 2) + 7) // 8) * 8)

    n_steps = pl.cdiv(B, bt)

    # --- VMEM budget (2x out block double-buffered + x blocks + consts +
    #     ~1x f32 angle + ~1x f32 cos intermediates), with 25% headroom ------
    out_block = bt * F * two_k * out_itemsize
    x_block = bt * F * x_itemsize
    const_blocks = 2 * F * two_k * 4
    interm = 2 * bt * F * two_k * 4
    needed = 2 * out_block + 2 * x_block + 2 * const_blocks + interm
    vmem_limit = int(min(max(needed * 5 // 4, 4 * 1024 * 1024), 32 * 1024 * 1024))

    out = pl.pallas_call(
        _periodic_kernel,
        out_shape=jax.ShapeDtypeStruct((B, F, two_k), out_dtype),
        grid_spec=pltpu.PrefetchScalarGridSpec(
            num_scalar_prefetch=0,
            grid=(n_steps,),
            in_specs=[
                pl.BlockSpec((bt, F), lambda i: (i, 0)),        # x tile
                pl.BlockSpec((F, two_k), lambda i: (0, 0)),     # W2 (constant)
                pl.BlockSpec((F, two_k), lambda i: (0, 0)),     # phase (constant)
            ],
            out_specs=pl.BlockSpec((bt, F, two_k), lambda i: (i, 0, 0)),
        ),
        compiler_params=pltpu.CompilerParams(
            dimension_semantics=("parallel",),
            vmem_limit_bytes=vmem_limit,
        ),
    )(x, w2, ph)
    return out


if __name__ == "__main__":
    # Deterministic synthetic module state + input (small shapes).
    n_features, n_frequencies, frequency_scale = 8, 64, 0.1
    B = 8

    key = jax.random.PRNGKey(0)
    k_freq, k_x = jax.random.split(key)
    frequencies = frequency_scale * jax.random.normal(
        k_freq, (n_features, n_frequencies), dtype=jnp.float32)
    x = jax.random.normal(k_x, (B, n_features), dtype=jnp.float32)

    y = periodic_embeddings(x, frequencies)
    y = jax.block_until_ready(y)

    # Pure-JAX reference (identical math to the PyTorch forward).
    angle = 2.0 * math.pi * frequencies[None] * x[..., None]
    ref = jnp.concatenate([jnp.cos(angle), jnp.sin(angle)], axis=-1)

    assert y.shape == (B, n_features, 2 * n_frequencies), y.shape
    err = float(jnp.max(jnp.abs(y - ref)))
    assert err < 1e-4, f"kernel output mismatch vs reference, max abs err {err}"

    print("KERNEL_OK")
</pallas_src>

<mosaic_0001>
module attributes {stable_mosaic.version = 11 : i64} {
  func.func @_periodic_kernel(%arg0: i32, %arg1: memref<8x8xf32, #tpu.memory_space<vmem>>, %arg2: memref<8x128xf32, #tpu.memory_space<vmem>>, %arg3: memref<8x128xf32, #tpu.memory_space<vmem>>, %arg4: memref<8x8x128xf32, #tpu.memory_space<vmem>>) attributes {dimension_semantics = [#tpu.dimension_semantics<parallel>], iteration_bounds = array<i64: 1>, scalar_prefetch = 0 : i64, scratch_operands = 0 : i64, tpu.core_type = #tpu.core_type<tc>, window_params = [{transform_indices = @transform_0, window_bounds = array<i64: 8, 8>}, {pipeline_mode = #tpu.pipeline_mode<synchronous>, transform_indices = @transform_1, window_bounds = array<i64: 8, 128>}, {pipeline_mode = #tpu.pipeline_mode<synchronous>, transform_indices = @transform_2, window_bounds = array<i64: 8, 128>}, {transform_indices = @transform_3, window_bounds = array<i64: 8, 8, 128>}]} {
    %c0 = arith.constant 0 : index
    %c0_0 = arith.constant 0 : index
    %0 = vector.load %arg1[%c0, %c0_0] : memref<8x8xf32, #tpu.memory_space<vmem>>, vector<8x8xf32>
    %1 = vector.shape_cast %0 : vector<8x8xf32> to vector<8x8x1xf32>
    %c0_1 = arith.constant 0 : index
    %c0_2 = arith.constant 0 : index
    %2 = vector.load %arg2[%c0_1, %c0_2] : memref<8x128xf32, #tpu.memory_space<vmem>>, vector<8x128xf32>
    %3 = vector.shape_cast %2 : vector<8x128xf32> to vector<1x8x128xf32>
    %4 = vector.broadcast %1 : vector<8x8x1xf32> to vector<8x8x128xf32>
    %5 = vector.broadcast %3 : vector<1x8x128xf32> to vector<8x8x128xf32>
    %6 = arith.mulf %4, %5 : vector<8x8x128xf32>
    %c0_3 = arith.constant 0 : index
    %c0_4 = arith.constant 0 : index
    %7 = vector.load %arg3[%c0_3, %c0_4] : memref<8x128xf32, #tpu.memory_space<vmem>>, vector<8x128xf32>
    %8 = vector.shape_cast %7 : vector<8x128xf32> to vector<1x8x128xf32>
    %9 = vector.broadcast %8 : vector<1x8x128xf32> to vector<8x8x128xf32>
    %10 = arith.addf %6, %9 : vector<8x8x128xf32>
    %11 = math.cos %10 : vector<8x8x128xf32>
    %c0_5 = arith.constant 0 : index
    %c0_6 = arith.constant 0 : index
    %c0_7 = arith.constant 0 : index
    %12 = vector.load %arg4[%c0_5, %c0_6, %c0_7] : memref<8x8x128xf32, #tpu.memory_space<vmem>>, vector<8x8x128xf32>
    tpu.vector_store %arg4[%c0_5, %c0_6, %c0_7], %11 {strides = array<i32>} : memref<8x8x128xf32, #tpu.memory_space<vmem>>, vector<8x8x128xf32>,
    return
  }
  func.func @transform_0(%arg0: i32) -> (i32, i32) {
    %c0_i32 = arith.constant 0 : i32
    %c0_i32_0 = arith.constant 0 : i32
    return %arg0, %c0_i32 : i32, i32
  }
  func.func @transform_1(%arg0: i32) -> (i32, i32) {
    %c0_i32 = arith.constant 0 : i32
    %c0_i32_0 = arith.constant 0 : i32
    %c0_i32_1 = arith.constant 0 : i32
    return %c0_i32, %c0_i32_0 : i32, i32
  }
  func.func @transform_2(%arg0: i32) -> (i32, i32) {
    %c0_i32 = arith.constant 0 : i32
    %c0_i32_0 = arith.constant 0 : i32
    %c0_i32_1 = arith.constant 0 : i32
    return %c0_i32, %c0_i32_0 : i32, i32
  }
  func.func @transform_3(%arg0: i32) -> (i32, i32, i32) {
    %c0_i32 = arith.constant 0 : i32
    %c0_i32_0 = arith.constant 0 : i32
    %c0_i32_1 = arith.constant 0 : i32
    return %arg0, %c0_i32, %c0_i32_0 : i32, i32, i32
  }
}

</mosaic_0001>

<llo_original>
// kernel: tpu_custom_call.1
$region0: #{tpu_custom_call.1}
  #allocation0 [shape = 'u32[]', space=smem, size = 0x4, offset = 0x4, fixed_abs, tag = 'smem constant byte address 0x4 - core index']
  #allocation1 [shape = 'u32[144,128]{1,0:T(1,128)}', space=vmem, size = 0x12000, scoped, tag = 'internal scratch']
  %s0 = inlined_call_operand.hbm [shape: f32[8,8], index: 0, kind: input, shape index: {}]
  %s1 = inlined_call_operand.hbm [shape: f32[8,128], index: 1, kind: input, shape index: {}]
  %s2 = inlined_call_operand.hbm [shape: f32[8,128], index: 2, kind: input, shape index: {}]
  %s3 = inlined_call_operand.hbm [shape: f32[8,8,128], index: 3, kind: output, shape index: {}]
  %s4 = sld [smem:[#allocation0]]
  $region34: #{tpu_custom_call.1} parent=0
    _
  %s6 = ssub.s32 1, %s4
  %s7 = scalar_select 0, %s6, %s4
  $region1: #{tpu_custom_call.1} parent=0
    #allocation2 [shape = 'u8[4096]{0}', space=vmem, size = 0x1000, scoped, tag = 'input window, operand 0, single buffered']
    #allocation3 [shape = 's32[1]{0}', space=sflag, size = 0x4, scoped, tag = 'scoped memory for tpu_custom_call.1']
    #allocation4 [shape = 's32[1]{0}', space=sflag, size = 0x4, scoped, tag = 'scoped memory for tpu_custom_call.1']
    #allocation5 [shape = 'u8[4096]{0}', space=vmem, size = 0x1000, scoped, tag = 'input window, operand 1, single buffered']
    #allocation6 [shape = 's32[1]{0}', space=sflag, size = 0x4, scoped, tag = 'scoped memory for tpu_custom_call.1']
    #allocation7 [shape = 'u8[4096]{0}', space=vmem, size = 0x1000, scoped, tag = 'input window, operand 2, single buffered']
    #allocation8 [shape = 'u8[32768]{0}', space=vmem, size = 0x8000, scoped, tag = 'output window, operand 0, single buffered']
    %8 = vsyncpa [#allocation3], 0
    %9 = vsyncpa [#allocation6], 0
    %10 = vsyncpa [#allocation4], 0
    // Predicated region
    $region2: #{tpu_custom_call.1} parent=1 // pred_check
      _
    $region3: #{tpu_custom_call.1} parent=1 // pred_check_branch
      %12 = sbr.rel (0) target = $region5
    $region4: #{tpu_custom_call.1} parent=1 // pred_region
      %s14 = ssub.s32 128, 128
      %15 = vsyncadd [#allocation3], %s14
      %s17 = sshll.u32 [#allocation2], 4
      %s18 = int_to_ptr.vmem [resolvable:$true] %s17
      %20 = dma.hbm_to_vmem [thread:$0]  %s0, 128, %s18, [#allocation3]
    $region5: #{tpu_custom_call.1} parent=1 // pred_fallthru
      _
    // Predicated region
    $region6: #{tpu_custom_call.1} parent=1 // pred_check
      _
    $region7: #{tpu_custom_call.1} parent=1 // pred_check_branch
      %22 = sbr.rel (0) target = $region9
    $region8: #{tpu_custom_call.1} parent=1 // pred_region
      %s24 = ssub.s32 128, 128
      %25 = vsyncadd [#allocation6], %s24
      %s27 = sshll.u32 [#allocation5], 4
      %s28 = int_to_ptr.vmem [resolvable:$true] %s27
      %30 = dma.hbm_to_vmem [thread:$0]  %s1, 128, %s28, [#allocation6]
    $region9: #{tpu_custom_call.1} parent=1 // pred_fallthru
      _
    // Predicated region
    $region10: #{tpu_custom_call.1} parent=1 // pred_check
      _
    $region11: #{tpu_custom_call.1} parent=1 // pred_check_branch
      %32 = sbr.rel (0) target = $region13
    $region12: #{tpu_custom_call.1} parent=1 // pred_region
      %s34 = ssub.s32 128, 128
      %35 = vsyncadd [#allocation6], %s34
      %s37 = sshll.u32 [#allocation7], 4
      %s38 = int_to_ptr.vmem [resolvable:$true] %s37
      %40 = dma.hbm_to_vmem [thread:$0]  %s2, 128, %s38, [#allocation6]
    $region13: #{tpu_custom_call.1} parent=1 // pred_fallthru
      _
    // Predicated region
    $region14: #{tpu_custom_call.1} parent=1 // pred_check
      _
    $region15: #{tpu_custom_call.1} parent=1 // pred_check_branch
      %42 = sbr.rel (0) target = $region17
    $region16: #{tpu_custom_call.1} parent=1 // pred_region
      %43 = dma.done [#allocation3], 128
    $region17: #{tpu_custom_call.1} parent=1 // pred_fallthru
      _
    // Predicated region
    $region18: #{tpu_custom_call.1} parent=1 // pred_check
      _
    $region19: #{tpu_custom_call.1} parent=1 // pred_check_branch
      %45 = sbr.rel (0) target = $region21
    $region20: #{tpu_custom_call.1} parent=1 // pred_region
      %46 = dma.done [#allocation6], 128
    $region21: #{tpu_custom_call.1} parent=1 // pred_fallthru
      _
    // Predicated region
    $region22: #{tpu_custom_call.1} parent=1 // pred_check
      _
    $region23: #{tpu_custom_call.1} parent=1 // pred_check_branch
      %48 = sbr.rel (0) target = $region25
    $region24: #{tpu_custom_call.1} parent=1 // pred_region
      %49 = dma.done [#allocation6], 128
    $region25: #{tpu_custom_call.1} parent=1 // pred_fallthru
      _
    %v50 = vld [vmem:[#allocation2] sm:$0xff]
    %v51 = vlaneseq
    %v52 = vshrl.u32 %v51, 7
    %v53 = vsub.s32 0, %v52
    %v54 = vrot.slane %v50, %v53
    %56 = vbcast.lane.b32.xlu0 %v54, 256
    %v57 = vpop.permute.xlu0 %56
    %v58 = vlaneseq
    %v59 = vshrl.u32 %v58, 7
    %v60 = vsub.s32 1, %v59
    %v61 = vrot.slane %v50, %v60
    %63 = vbcast.lane.b32.xlu0 %v61, 256
    %v64 = vpop.permute.xlu0 %63
    %v65 = vlaneseq
    %v66 = vshrl.u32 %v65, 7
    %v67 = vsub.s32 2, %v66
    %v68 = vrot.slane %v50, %v67
    %70 = vbcast.lane.b32.xlu0 %v68, 256
    %v71 = vpop.permute.xlu0 %70
    %v72 = vlaneseq
    %v73 = vshrl.u32 %v72, 7
    %v74 = vsub.s32 3, %v73
    %v75 = vrot.slane %v50, %v74
    %77 = vbcast.lane.b32.xlu0 %v75, 256
    %v78 = vpop.permute.xlu0 %77
    %v79 = vlaneseq
    %v80 = vshrl.u32 %v79, 7
    %v81 = vsub.s32 4, %v80
    %v82 = vrot.slane %v50, %v81
    %84 = vbcast.lane.b32.xlu0 %v82, 256
    %v85 = vpop.permute.xlu0 %84
    %v86 = vlaneseq
    %v87 = vshrl.u32 %v86, 7
    %v88 = vsub.s32 5, %v87
    %v89 = vrot.slane %v50, %v88
    %91 = vbcast.lane.b32.xlu0 %v89, 256
    %v92 = vpop.permute.xlu0 %91
    %v93 = vlaneseq
    %v94 = vshrl.u32 %v93, 7
    %v95 = vsub.s32 6, %v94
    %v96 = vrot.slane %v50, %v95
    %98 = vbcast.lane.b32.xlu0 %v96, 256
    %v99 = vpop.permute.xlu0 %98
    %v100 = vlaneseq
    %v101 = vshrl.u32 %v100, 7
    %v102 = vsub.s32 7, %v101
    %v103 = vrot.slane %v50, %v102
    %105 = vbcast.lane.b32.xlu0 %v103, 256
    %v106 = vpop.permute.xlu0 %105
    %v107 = vld [vmem:[#allocation5] sm:$0xff]
    %v108 = vmul.f32 %v57, %v107
    %v109 = vmul.f32 %v64, %v107
    %v110 = vmul.f32 %v71, %v107
    %v111 = vmul.f32 %v78, %v107
    %v112 = vmul.f32 %v85, %v107
    %v113 = vmul.f32 %v92, %v107
    %v114 = vmul.f32 %v99, %v107
    %v115 = vmul.f32 %v106, %v107
    %v116 = vld [vmem:[#allocation7] sm:$0xff]
    %v117 = vadd.f32 %v108, %v116
    %v118 = vadd.f32 %v109, %v116
    %v119 = vadd.f32 %v110, %v116
    %v120 = vadd.f32 %v111, %v116
    %v121 = vadd.f32 %v112, %v116
    %v122 = vadd.f32 %v113, %v116
    %v123 = vadd.f32 %v114, %v116
    %v124 = vadd.f32 %v115, %v116
    %v125 = vand.u32 2147483647, %v117
    %vm126 = vcmp.le.f32.partialorder %v125, 0.7853982
    %vm127 = vcmp.lt.s32.totalorder %v117, 0
    %v128 = vand.u32 %v117, 2139095040
    %v129 = vshrl.u32 %v128, 23
    %v130 = vsub.s32 %v129, 127
    %v131 = vand.u32 2147483647, %v117
    %v132 = vand.u32 %v131, 8388607
    %v133 = vor.u32 %v132, 8388608
    %v134 = vsub.s32 0, %v133
    %v135 = vadd.s32 %v130, 1
    %vm136 = vcmp.gt.s32.totalorder %v135, 0
    %v137 = vsel %vm136, %v135, 0
    %v138 = vshrl.u32 %v137, 5
    %v139 = vand.u32 %v137, 31
    %v140 = vsub.s32 32, %v139
    %v141 = vshrl.u32 683565275, %v140
    %v142 = vshll.u32 683565275, %v139
    %v143 = vshrl.u32 2475754826, %v140
    %v144 = vor.u32 %v142, %v143
    %v145 = vshll.u32 2475754826, %v139
    %v146 = vshrl.u32 2131351028, %v140
    %v147 = vor.u32 %v145, %v146
    %v148 = vshll.u32 2131351028, %v139
    %v149 = vshrl.u32 2102212464, %v140
    %v150 = vor.u32 %v148, %v149
    %v151 = vshll.u32 2102212464, %v139
    %v152 = vshrl.u32 920167782, %v140
    %v153 = vor.u32 %v151, %v152
    %v154 = vshll.u32 920167782, %v139
    %v155 = vshrl.u32 1326507024, %v140
    %v156 = vor.u32 %v154, %v155
    %vm157 = vcmp.lt.s32.totalorder %v138, 1
    %vm158 = vcmp.lt.s32.totalorder %v138, 2
    %vm159 = vcmp.lt.s32.totalorder %v138, 3
    %vm160 = vcmp.lt.s32.totalorder %v138, 4
    %v161 = vsel %vm157, %v141, %v144
    %v162 = vsel %vm160, %v150, 2102212464
    %v163 = vsel %vm159, %v147, %v162
    %v164 = vsel %vm158, %v161, %v163
    %v165 = vsel %vm157, %v144, %v147
    %v166 = vsel %vm160, %v153, 920167782
    %v167 = vsel %vm159, %v150, %v166
    %v168 = vsel %vm158, %v165, %v167
    %v169 = vsel %vm157, %v147, %v150
    %v170 = vsel %vm160, %v156, 1326507024
    %v171 = vsel %vm159, %v153, %v170
    %v172 = vsel %vm158, %v169, %v171
    %v173 = vshll.u32 %v133, 8
    %v174 = vmul.u32.u64.compose %v173, %v172
    %v175 = vextract.low.u32 %v174
    %v176 = vextract.high.u32 %v174
    %v177 = vmul.u32.u64.compose %v173, %v168
    %v178 = vextract.low.u32 %v177
    %v179 = vextract.high.u32 %v177
    %v180 = vmul.u32 %v173, %v164
    %v181 = vadd.s32 %v176, %v178
    %vm182 = vc.u32 %v176, %v178
    %v183 = vadd.s32 %v179, 1
    %v184 = vsel %vm182, %v183, %v179
    %v185 = vadd.s32 %v180, %v184
    %v186 = vadd.s32 %v185, 536870912
    %v187 = vshrl.u32 %v186, 30
    %v188 = vshll.u32 %v187, 30
    %v189 = vsub.s32 %v185, %v188
    %vm190 = vcmp.lt.s32.totalorder %v189, 0
    %v191 = vsub.s32 0, %v189
    %v192 = vsel %vm190, %v191, %v189
    %v193 = vclz %v192
    %v194 = vsub.s32 %v193, 2
    %vm195 = vcmp.gt.s32.totalorder 0, %v194
    %v196 = vsel %vm195, 0, %v194
    %v197 = vsub.s32 32, %v196
    %v198 = vshll.u32 %v189, %v196
    %v199 = vshrl.u32 %v181, %v197
    %v200 = vor.u32 %v198, %v199
    %v201 = vsub.s32 4294967266, %v196
    %v202 = vadd.s32 %v201, 127
    %v203 = vshll.u32 %v202, 23
    %v204 = vor.u32 4788187, %v203
    %v205 = vand.u32 2147483647, %v204
    %v207 = vcvt.s32.f32 %v200
    %v208 = vmul.f32 %v207, %v205
    %v209 = vxor.u32 %v208, 2147483648
    %v210 = vsel %vm127, %v209, %v208
    %v211 = vsub.s32 4, %v187
    %v212 = vsel %vm127, %v211, %v187
    %v213 = vsel %vm126, %v117, %v210
    %v214 = vsel %vm126, 0, %v212
    %v215 = vcosq.f32.pop %v213
    %v216 = vsinq.f32.pop %v213
    %vm217 = vweird.f32 %v117
    %v218 = vand.u32 %v214, 3
    %vm219 = vcmp.lt.s32.totalorder %v218, 2
    %vm220 = vcmp.eq.s32.totalorder %v218, 0
    %v221 = vxor.u32 %v216, 2147483648
    %v222 = vsel %vm220, %v215, %v221
    %vm223 = vcmp.eq.s32.totalorder %v218, 2
    %v224 = vxor.u32 %v215, 2147483648
    %v225 = vsel %vm223, %v224, %v216
    %v226 = vsel %vm219, %v222, %v225
    %v227 = vsel %vm217, nan, %v226
    %v228 = vand.u32 2147483647, %v118
    %vm229 = vcmp.le.f32.partialorder %v228, 0.7853982
    %vm230 = vcmp.lt.s32.totalorder %v118, 0
    %v231 = vand.u32 %v118, 2139095040
    %v232 = vshrl.u32 %v231, 23
    %v233 = vsub.s32 %v232, 127
    %v234 = vand.u32 2147483647, %v118
    %v235 = vand.u32 %v234, 8388607
    %v236 = vor.u32 %v235, 8388608
    %v237 = vsub.s32 0, %v236
    %v238 = vadd.s32 %v233, 1
    %vm239 = vcmp.gt.s32.totalorder %v238, 0
    %v240 = vsel %vm239, %v238, 0
    %v241 = vshrl.u32 %v240, 5
    %v242 = vand.u32 %v240, 31
    %v243 = vsub.s32 32, %v242
    %v244 = vshrl.u32 683565275, %v243
    %v245 = vshll.u32 683565275, %v242
    %v246 = vshrl.u32 2475754826, %v243
    %v247 = vor.u32 %v245, %v246
    %v248 = vshll.u32 2475754826, %v242
    %v249 = vshrl.u32 2131351028, %v243
    %v250 = vor.u32 %v248, %v249
    %v251 = vshll.u32 2131351028, %v242
    %v252 = vshrl.u32 2102212464, %v243
    %v253 = vor.u32 %v251, %v252
    %v254 = vshll.u32 2102212464, %v242
    %v255 = vshrl.u32 920167782, %v243
    %v256 = vor.u32 %v254, %v255
    %v257 = vshll.u32 920167782, %v242
    %v258 = vshrl.u32 1326507024, %v243
    %v259 = vor.u32 %v257, %v258
    %vm260 = vcmp.lt.s32.totalorder %v241, 1
    %vm261 = vcmp.lt.s32.totalorder %v241, 2
    %vm262 = vcmp.lt.s32.totalorder %v241, 3
    %vm263 = vcmp.lt.s32.totalorder %v241, 4
    %v264 = vsel %vm260, %v244, %v247
    %v265 = vsel %vm263, %v253, 2102212464
    %v266 = vsel %vm262, %v250, %v265
    %v267 = vsel %vm261, %v264, %v266
    %v268 = vsel %vm260, %v247, %v250
    %v269 = vsel %vm263, %v256, 920167782
    %v270 = vsel %vm262, %v253, %v269
    %v271 = vsel %vm261, %v268, %v270
    %v272 = vsel %vm260, %v250, %v253
    %v273 = vsel %vm263, %v259, 1326507024
    %v274 = vsel %vm262, %v256, %v273
    %v275 = vsel %vm261, %v272, %v274
    %v276 = vshll.u32 %v236, 8
    %v277 = vmul.u32.u64.compose %v276, %v275
    %v278 = vextract.low.u32 %v277
    %v279 = vextract.high.u32 %v277
    %v280 = vmul.u32.u64.compose %v276, %v271
    %v281 = vextract.low.u32 %v280
    %v282 = vextract.high.u32 %v280
    %v283 = vmul.u32 %v276, %v267
    %v284 = vadd.s32 %v279, %v281
    %vm285 = vc.u32 %v279, %v281
    %v286 = vadd.s32 %v282, 1
    %v287 = vsel %vm285, %v286, %v282
    %v288 = vadd.s32 %v283, %v287
    %v289 = vadd.s32 %v288, 536870912
    %v290 = vshrl.u32 %v289, 30
    %v291 = vshll.u32 %v290, 30
    %v292 = vsub.s32 %v288, %v291
    %vm293 = vcmp.lt.s32.totalorder %v292, 0
    %v294 = vsub.s32 0, %v292
    %v295 = vsel %vm293, %v294, %v292
    %v296 = vclz %v295
    %v297 = vsub.s32 %v296, 2
    %vm298 = vcmp.gt.s32.totalorder 0, %v297
    %v299 = vsel %vm298, 0, %v297
    %v300 = vsub.s32 32, %v299
    %v301 = vshll.u32 %v292, %v299
    %v302 = vshrl.u32 %v284, %v300
    %v303 = vor.u32 %v301, %v302
    %v304 = vsub.s32 4294967266, %v299
    %v305 = vadd.s32 %v304, 127
    %v306 = vshll.u32 %v305, 23
    %v307 = vor.u32 4788187, %v306
    %v308 = vand.u32 2147483647, %v307
    %v310 = vcvt.s32.f32 %v303
    %v311 = vmul.f32 %v310, %v308
    %v312 = vxor.u32 %v311, 2147483648
    %v313 = vsel %vm230, %v312, %v311
    %v314 = vsub.s32 4, %v290
    %v315 = vsel %vm230, %v314, %v290
    %v316 = vsel %vm229, %v118, %v313
    %v317 = vsel %vm229, 0, %v315
    %v318 = vcosq.f32.pop %v316
    %v319 = vsinq.f32.pop %v316
    %vm320 = vweird.f32 %v118
    %v321 = vand.u32 %v317, 3
    %vm322 = vcmp.lt.s32.totalorder %v321, 2
    %vm323 = vcmp.eq.s32.totalorder %v321, 0
    %v324 = vxor.u32 %v319, 2147483648
    %v325 = vsel %vm323, %v318, %v324
    %vm326 = vcmp.eq.s32.totalorder %v321, 2
    %v327 = vxor.u32 %v318, 2147483648
    %v328 = vsel %vm326, %v327, %v319
    %v329 = vsel %vm322, %v325, %v328
    %v330 = vsel %vm320, nan, %v329
    %v331 = vand.u32 2147483647, %v119
    %vm332 = vcmp.le.f32.partialorder %v331, 0.7853982
    %vm333 = vcmp.lt.s32.totalorder %v119, 0
    %v334 = vand.u32 %v119, 2139095040
    %v335 = vshrl.u32 %v334, 23
    %v336 = vsub.s32 %v335, 127
    %v337 = vand.u32 2147483647, %v119
    %v338 = vand.u32 %v337, 8388607
    %v339 = vor.u32 %v338, 8388608
    %v340 = vsub.s32 0, %v339
    %v341 = vadd.s32 %v336, 1
    %vm342 = vcmp.gt.s32.totalorder %v341, 0
    %v343 = vsel %vm342, %v341, 0
    %v344 = vshrl.u32 %v343, 5
    %v345 = vand.u32 %v343, 31
    %v346 = vsub.s32 32, %v345
    %v347 = vshrl.u32 683565275, %v346
    %v348 = vshll.u32 683565275, %v345
    %v349 = vshrl.u32 2475754826, %v346
    %v350 = vor.u32 %v348, %v349
    %v351 = vshll.u32 2475754826, %v345
    %v352 = vshrl.u32 2131351028, %v346
    %v353 = vor.u32 %v351, %v352
    %v354 = vshll.u32 2131351028, %v345
    %v355 = vshrl.u32 2102212464, %v346
    %v356 = vor.u32 %v354, %v355
    %v357 = vshll.u32 2102212464, %v345
    %v358 = vshrl.u32 920167782, %v346
    %v359 = vor.u32 %v357, %v358
    %v360 = vshll.u32 920167782, %v345
    %v361 = vshrl.u32 1326507024, %v346
    %v362 = vor.u32 %v360, %v361
    %vm363 = vcmp.lt.s32.totalorder %v344, 1
    %vm364 = vcmp.lt.s32.totalorder %v344, 2
    %vm365 = vcmp.lt.s32.totalorder %v344, 3
    %vm366 = vcmp.lt.s32.totalorder %v344, 4
    %v367 = vsel %vm363, %v347, %v350
    %v368 = vsel %vm366, %v356, 2102212464
    %v369 = vsel %vm365, %v353, %v368
    %v370 = vsel %vm364, %v367, %v369
    %v371 = vsel %vm363, %v350, %v353
    %v372 = vsel %vm366, %v359, 920167782
    %v373 = vsel %vm365, %v356, %v372
    %v374 = vsel %vm364, %v371, %v373
    %v375 = vsel %vm363, %v353, %v356
    %v376 = vsel %vm366, %v362, 1326507024
    %v377 = vsel %vm365, %v359, %v376
    %v378 = vsel %vm364, %v375, %v377
    %v379 = vshll.u32 %v339, 8
    %v380 = vmul.u32.u64.compose %v379, %v378
    %v381 = vextract.low.u32 %v380
    %v382 = vextract.high.u32 %v380
    %v383 = vmul.u32.u64.compose %v379, %v374
    %v384 = vextract.low.u32 %v383
    %v385 = vextract.high.u32 %v383
    %v386 = vmul.u32 %v379, %v370
    %v387 = vadd.s32 %v382, %v384
    %vm388 = vc.u32 %v382, %v384
    %v389 = vadd.s32 %v385, 1
    %v390 = vsel %vm388, %v389, %v385
    %v391 = vadd.s32 %v386, %v390
    %v392 = vadd.s32 %v391, 536870912
    %v393 = vshrl.u32 %v392, 30
    %v394 = vshll.u32 %v393, 30
    %v395 = vsub.s32 %v391, %v394
    %vm396 = vcmp.lt.s32.totalorder %v395, 0
    %v397 = vsub.s32 0, %v395
    %v398 = vsel %vm396, %v397, %v395
    %v399 = vclz %v398
    %v400 = vsub.s32 %v399, 2
    %vm401 = vcmp.gt.s32.totalorder 0, %v400
    %v402 = vsel %vm401, 0, %v400
    %v403 = vsub.s32 32, %v402
    %v404 = vshll.u32 %v395, %v402
    %v405 = vshrl.u32 %v387, %v403
    %v406 = vor.u32 %v404, %v405
    %v407 = vsub.s32 4294967266, %v402
    %v408 = vadd.s32 %v407, 127
    %v409 = vshll.u32 %v408, 23
    %v410 = vor.u32 4788187, %v409
    %v411 = vand.u32 2147483647, %v410
    %v413 = vcvt.s32.f32 %v406
    %v414 = vmul.f32 %v413, %v411
    %v415 = vxor.u32 %v414, 2147483648
    %v416 = vsel %vm333, %v415, %v414
    %v417 = vsub.s32 4, %v393
    %v418 = vsel %vm333, %v417, %v393
    %v419 = vsel %vm332, %v119, %v416
    %v420 = vsel %vm332, 0, %v418
    %v421 = vcosq.f32.pop %v419
    %v422 = vsinq.f32.pop %v419
    %vm423 = vweird.f32 %v119
    %v424 = vand.u32 %v420, 3
    %vm425 = vcmp.lt.s32.totalorder %v424, 2
    %vm426 = vcmp.eq.s32.totalorder %v424, 0
    %v427 = vxor.u32 %v422, 2147483648
    %v428 = vsel %vm426, %v421, %v427
    %vm429 = vcmp.eq.s32.totalorder %v424, 2
    %v430 = vxor.u32 %v421, 2147483648
    %v431 = vsel %vm429, %v430, %v422
    %v432 = vsel %vm425, %v428, %v431
    %v433 = vsel %vm423, nan, %v432
    %v434 = vand.u32 2147483647, %v120
    %vm435 = vcmp.le.f32.partialorder %v434, 0.7853982
    %vm436 = vcmp.lt.s32.totalorder %v120, 0
    %v437 = vand.u32 %v120, 2139095040
    %v438 = vshrl.u32 %v437, 23
    %v439 = vsub.s32 %v438, 127
    %v440 = vand.u32 2147483647, %v120
    %v441 = vand.u32 %v440, 8388607
    %v442 = vor.u32 %v441, 8388608
    %v443 = vsub.s32 0, %v442
    %v444 = vadd.s32 %v439, 1
    %vm445 = vcmp.gt.s32.totalorder %v444, 0
    %v446 = vsel %vm445, %v444, 0
    %v447 = vshrl.u32 %v446, 5
    %v448 = vand.u32 %v446, 31
    %v449 = vsub.s32 32, %v448
    %v450 = vshrl.u32 683565275, %v449
    %v451 = vshll.u32 683565275, %v448
    %v452 = vshrl.u32 2475754826, %v449
    %v453 = vor.u32 %v451, %v452
    %v454 = vshll.u32 2475754826, %v448
    %v455 = vshrl.u32 2131351028, %v449
    %v456 = vor.u32 %v454, %v455
    %v457 = vshll.u32 2131351028, %v448
    %v458 = vshrl.u32 2102212464, %v449
    %v459 = vor.u32 %v457, %v458
    %v460 = vshll.u32 2102212464, %v448
    %v461 = vshrl.u32 920167782, %v449
    %v462 = vor.u32 %v460, %v461
    %v463 = vshll.u32 920167782, %v448
    %v464 = vshrl.u32 1326507024, %v449
    %v465 = vor.u32 %v463, %v464
    %vm466 = vcmp.lt.s32.totalorder %v447, 1
    %vm467 = vcmp.lt.s32.totalorder %v447, 2
    %vm468 = vcmp.lt.s32.totalorder %v447, 3
    %vm469 = vcmp.lt.s32.totalorder %v447, 4
    %v470 = vsel %vm466, %v450, %v453
    %v471 = vsel %vm469, %v459, 2102212464
    %v472 = vsel %vm468, %v456, %v471
    %v473 = vsel %vm467, %v470, %v472
    %v474 = vsel %vm466, %v453, %v456
    %v475 = vsel %vm469, %v462, 920167782
    %v476 = vsel %vm468, %v459, %v475
    %v477 = vsel %vm467, %v474, %v476
    %v478 = vsel %vm466, %v456, %v459
    %v479 = vsel %vm469, %v465, 1326507024
    %v480 = vsel %vm468, %v462, %v479
    %v481 = vsel %vm467, %v478, %v480
    %v482 = vshll.u32 %v442, 8
    %v483 = vmul.u32.u64.compose %v482, %v481
    %v484 = vextract.low.u32 %v483
    %v485 = vextract.high.u32 %v483
    %v486 = vmul.u32.u64.compose %v482, %v477
    %v487 = vextract.low.u32 %v486
    %v488 = vextract.high.u32 %v486
    %v489 = vmul.u32 %v482, %v473
    %v490 = vadd.s32 %v485, %v487
    %vm491 = vc.u32 %v485, %v487
    %v492 = vadd.s32 %v488, 1
    %v493 = vsel %vm491, %v492, %v488
    %v494 = vadd.s32 %v489, %v493
    %v495 = vadd.s32 %v494, 536870912
    %v496 = vshrl.u32 %v495, 30
    %v497 = vshll.u32 %v496, 30
    %v498 = vsub.s32 %v494, %v497
    %vm499 = vcmp.lt.s32.totalorder %v498, 0
    %v500 = vsub.s32 0, %v498
    %v501 = vsel %vm499, %v500, %v498
    %v502 = vclz %v501
    %v503 = vsub.s32 %v502, 2
    %vm504 = vcmp.gt.s32.totalorder 0, %v503
    %v505 = vsel %vm504, 0, %v503
    %v506 = vsub.s32 32, %v505
    %v507 = vshll.u32 %v498, %v505
    %v508 = vshrl.u32 %v490, %v506
    %v509 = vor.u32 %v507, %v508
    %v510 = vsub.s32 4294967266, %v505
    %v511 = vadd.s32 %v510, 127
    %v512 = vshll.u32 %v511, 23
    %v513 = vor.u32 4788187, %v512
    %v514 = vand.u32 2147483647, %v513
    %v516 = vcvt.s32.f32 %v509
    %v517 = vmul.f32 %v516, %v514
    %v518 = vxor.u32 %v517, 2147483648
    %v519 = vsel %vm436, %v518, %v517
    %v520 = vsub.s32 4, %v496
    %v521 = vsel %vm436, %v520, %v496
    %v522 = vsel %vm435, %v120, %v519
    %v523 = vsel %vm435, 0, %v521
    %v524 = vcosq.f32.pop %v522
    %v525 = vsinq.f32.pop %v522
    %vm526 = vweird.f32 %v120
    %v527 = vand.u32 %v523, 3
    %vm528 = vcmp.lt.s32.totalorder %v527, 2
    %vm529 = vcmp.eq.s32.totalorder %v527, 0
    %v530 = vxor.u32 %v525, 2147483648
    %v531 = vsel %vm529, %v524, %v530
    %vm532 = vcmp.eq.s32.totalorder %v527, 2
    %v533 = vxor.u32 %v524, 2147483648
    %v534 = vsel %vm532, %v533, %v525
    %v535 = vsel %vm528, %v531, %v534
    %v536 = vsel %vm526, nan, %v535
    %v537 = vand.u32 2147483647, %v121
    %vm538 = vcmp.le.f32.partialorder %v537, 0.7853982
    %vm539 = vcmp.lt.s32.totalorder %v121, 0
    %v540 = vand.u32 %v121, 2139095040
    %v541 = vshrl.u32 %v540, 23
    %v542 = vsub.s32 %v541, 127
    %v543 = vand.u32 2147483647, %v121
    %v544 = vand.u32 %v543, 8388607
    %v545 = vor.u32 %v544, 8388608
    %v546 = vsub.s32 0, %v545
    %v547 = vadd.s32 %v542, 1
    %vm548 = vcmp.gt.s32.totalorder %v547, 0
    %v549 = vsel %vm548, %v547, 0
    %v550 = vshrl.u32 %v549, 5
    %v551 = vand.u32 %v549, 31
    %v552 = vsub.s32 32, %v551
    %v553 = vshrl.u32 683565275, %v552
    %v554 = vshll.u32 683565275, %v551
    %v555 = vshrl.u32 2475754826, %v552
    %v556 = vor.u32 %v554, %v555
    %v557 = vshll.u32 2475754826, %v551
    %v558 = vshrl.u32 2131351028, %v552
    %v559 = vor.u32 %v557, %v558
    %v560 = vshll.u32 2131351028, %v551
    %v561 = vshrl.u32 2102212464, %v552
    %v562 = vor.u32 %v560, %v561
    %v563 = vshll.u32 2102212464, %v551
    %v564 = vshrl.u32 920167782, %v552
    %v565 = vor.u32 %v563, %v564
    %v566 = vshll.u32 920167782, %v551
    %v567 = vshrl.u32 1326507024, %v552
    %v568 = vor.u32 %v566, %v567
    %vm569 = vcmp.lt.s32.totalorder %v550, 1
    %vm570 = vcmp.lt.s32.totalorder %v550, 2
    %vm571 = vcmp.lt.s32.totalorder %v550, 3
    %vm572 = vcmp.lt.s32.totalorder %v550, 4
    %v573 = vsel %vm569, %v553, %v556
    %v574 = vsel %vm572, %v562, 2102212464
    %v575 = vsel %vm571, %v559, %v574
    %v576 = vsel %vm570, %v573, %v575
    %v577 = vsel %vm569, %v556, %v559
    %v578 = vsel %vm572, %v565, 920167782
    %v579 = vsel %vm571, %v562, %v578
    %v580 = vsel %vm570, %v577, %v579
    %v581 = vsel %vm569, %v559, %v562
    %v582 = vsel %vm572, %v568, 1326507024
    %v583 = vsel %vm571, %v565, %v582
    %v584 = vsel %vm570, %v581, %v583
    %v585 = vshll.u32 %v545, 8
    %v586 = vmul.u32.u64.compose %v585, %v584
    %v587 = vextract.low.u32 %v586
    %v588 = vextract.high.u32 %v586
    %v589 = vmul.u32.u64.compose %v585, %v580
    %v590 = vextract.low.u32 %v589
    %v591 = vextract.high.u32 %v589
    %v592 = vmul.u32 %v585, %v576
    %v593 = vadd.s32 %v588, %v590
    %vm594 = vc.u32 %v588, %v590
    %v595 = vadd.s32 %v591, 1
    %v596 = vsel %vm594, %v595, %v591
    %v597 = vadd.s32 %v592, %v596
    %v598 = vadd.s32 %v597, 536870912
    %v599 = vshrl.u32 %v598, 30
    %v600 = vshll.u32 %v599, 30
    %v601 = vsub.s32 %v597, %v600
    %vm602 = vcmp.lt.s32.totalorder %v601, 0
    %v603 = vsub.s32 0, %v601
    %v604 = vsel %vm602, %v603, %v601
    %v605 = vclz %v604
    %v606 = vsub.s32 %v605, 2
    %vm607 = vcmp.gt.s32.totalorder 0, %v606
    %v608 = vsel %vm607, 0, %v606
    %v609 = vsub.s32 32, %v608
    %v610 = vshll.u32 %v601, %v608
    %v611 = vshrl.u32 %v593, %v609
    %v612 = vor.u32 %v610, %v611
    %v613 = vsub.s32 4294967266, %v608
    %v614 = vadd.s32 %v613, 127
    %v615 = vshll.u32 %v614, 23
    %v616 = vor.u32 4788187, %v615
    %v617 = vand.u32 2147483647, %v616
    %v619 = vcvt.s32.f32 %v612
    %v620 = vmul.f32 %v619, %v617
    %v621 = vxor.u32 %v620, 2147483648
    %v622 = vsel %vm539, %v621, %v620
    %v623 = vsub.s32 4, %v599
    %v624 = vsel %vm539, %v623, %v599
    %v625 = vsel %vm538, %v121, %v622
    %v626 = vsel %vm538, 0, %v624
    %v627 = vcosq.f32.pop %v625
    %v628 = vsinq.f32.pop %v625
    %vm629 = vweird.f32 %v121
    %v630 = vand.u32 %v626, 3
    %vm631 = vcmp.lt.s32.totalorder %v630, 2
    %vm632 = vcmp.eq.s32.totalorder %v630, 0
    %v633 = vxor.u32 %v628, 2147483648
    %v634 = vsel %vm632, %v627, %v633
    %vm635 = vcmp.eq.s32.totalorder %v630, 2
    %v636 = vxor.u32 %v627, 2147483648
    %v637 = vsel %vm635, %v636, %v628
    %v638 = vsel %vm631, %v634, %v637
    %v639 = vsel %vm629, nan, %v638
    %v640 = vand.u32 2147483647, %v122
    %vm641 = vcmp.le.f32.partialorder %v640, 0.7853982
    %vm642 = vcmp.lt.s32.totalorder %v122, 0
    %v643 = vand.u32 %v122, 2139095040
    %v644 = vshrl.u32 %v643, 23
    %v645 = vsub.s32 %v644, 127
    %v646 = vand.u32 2147483647, %v122
    %v647 = vand.u32 %v646, 8388607
    %v648 = vor.u32 %v647, 8388608
    %v649 = vsub.s32 0, %v648
    %v650 = vadd.s32 %v645, 1
    %vm651 = vcmp.gt.s32.totalorder %v650, 0
    %v652 = vsel %vm651, %v650, 0
    %v653 = vshrl.u32 %v652, 5
    %v654 = vand.u32 %v652, 31
    %v655 = vsub.s32 32, %v654
    %v656 = vshrl.u32 683565275, %v655
    %v657 = vshll.u32 683565275, %v654
    %v658 = vshrl.u32 2475754826, %v655
    %v659 = vor.u32 %v657, %v658
    %v660 = vshll.u32 2475754826, %v654
    %v661 = vshrl.u32 2131351028, %v655
    %v662 = vor.u32 %v660, %v661
    %v663 = vshll.u32 2131351028, %v654
    %v664 = vshrl.u32 2102212464, %v655
    %v665 = vor.u32 %v663, %v664
    %v666 = vshll.u32 2102212464, %v654
    %v667 = vshrl.u32 920167782, %v655
    %v668 = vor.u32 %v666, %v667
    %v669 = vshll.u32 920167782, %v654
    %v670 = vshrl.u32 1326507024, %v655
    %v671 = vor.u32 %v669, %v670
    %vm672 = vcmp.lt.s32.totalorder %v653, 1
    %vm673 = vcmp.lt.s32.totalorder %v653, 2
    %vm674 = vcmp.lt.s32.totalorder %v653, 3
    %vm675 = vcmp.lt.s32.totalorder %v653, 4
    %v676 = vsel %vm672, %v656, %v659
    %v677 = vsel %vm675, %v665, 2102212464
    %v678 = vsel %vm674, %v662, %v677
    %v679 = vsel %vm673, %v676, %v678
    %v680 = vsel %vm672, %v659, %v662
    %v681 = vsel %vm675, %v668, 920167782
    %v682 = vsel %vm674, %v665, %v681
    %v683 = vsel %vm673, %v680, %v682
    %v684 = vsel %vm672, %v662, %v665
    %v685 = vsel %vm675, %v671, 1326507024
    %v686 = vsel %vm674, %v668, %v685
    %v687 = vsel %vm673, %v684, %v686
    %v688 = vshll.u32 %v648, 8
    %v689 = vmul.u32.u64.compose %v688, %v687
    %v690 = vextract.low.u32 %v689
    %v691 = vextract.high.u32 %v689
    %v692 = vmul.u32.u64.compose %v688, %v683
    %v693 = vextract.low.u32 %v692
    %v694 = vextract.high.u32 %v692
    %v695 = vmul.u32 %v688, %v679
    %v696 = vadd.s32 %v691, %v693
    %vm697 = vc.u32 %v691, %v693
    %v698 = vadd.s32 %v694, 1
    %v699 = vsel %vm697, %v698, %v694
    %v700 = vadd.s32 %v695, %v699
    %v701 = vadd.s32 %v700, 536870912
    %v702 = vshrl.u32 %v701, 30
    %v703 = vshll.u32 %v702, 30
    %v704 = vsub.s32 %v700, %v703
    %vm705 = vcmp.lt.s32.totalorder %v704, 0
    %v706 = vsub.s32 0, %v704
    %v707 = vsel %vm705, %v706, %v704
    %v708 = vclz %v707
    %v709 = vsub.s32 %v708, 2
    %vm710 = vcmp.gt.s32.totalorder 0, %v709
    %v711 = vsel %vm710, 0, %v709
    %v712 = vsub.s32 32, %v711
    %v713 = vshll.u32 %v704, %v711
    %v714 = vshrl.u32 %v696, %v712
    %v715 = vor.u32 %v713, %v714
    %v716 = vsub.s32 4294967266, %v711
    %v717 = vadd.s32 %v716, 127
    %v718 = vshll.u32 %v717, 23
    %v719 = vor.u32 4788187, %v718
    %v720 = vand.u32 2147483647, %v719
    %v722 = vcvt.s32.f32 %v715
    %v723 = vmul.f32 %v722, %v720
    %v724 = vxor.u32 %v723, 2147483648
    %v725 = vsel %vm642, %v724, %v723
    %v726 = vsub.s32 4, %v702
    %v727 = vsel %vm642, %v726, %v702
    %v728 = vsel %vm641, %v122, %v725
    %v729 = vsel %vm641, 0, %v727
    %v730 = vcosq.f32.pop %v728
    %v731 = vsinq.f32.pop %v728
    %vm732 = vweird.f32 %v122
    %v733 = vand.u32 %v729, 3
    %vm734 = vcmp.lt.s32.totalorder %v733, 2
    %vm735 = vcmp.eq.s32.totalorder %v733, 0
    %v736 = vxor.u32 %v731, 2147483648
    %v737 = vsel %vm735, %v730, %v736
    %vm738 = vcmp.eq.s32.totalorder %v733, 2
    %v739 = vxor.u32 %v730, 2147483648
    %v740 = vsel %vm738, %v739, %v731
    %v741 = vsel %vm734, %v737, %v740
    %v742 = vsel %vm732, nan, %v741
    %v743 = vand.u32 2147483647, %v123
    %vm744 = vcmp.le.f32.partialorder %v743, 0.7853982
    %vm745 = vcmp.lt.s32.totalorder %v123, 0
    %v746 = vand.u32 %v123, 2139095040
    %v747 = vshrl.u32 %v746, 23
    %v748 = vsub.s32 %v747, 127
    %v749 = vand.u32 2147483647, %v123
    %v750 = vand.u32 %v749, 8388607
    %v751 = vor.u32 %v750, 8388608
    %v752 = vsub.s32 0, %v751
    %v753 = vadd.s32 %v748, 1
    %vm754 = vcmp.gt.s32.totalorder %v753, 0
    %v755 = vsel %vm754, %v753, 0
    %v756 = vshrl.u32 %v755, 5
    %v757 = vand.u32 %v755, 31
    %v758 = vsub.s32 32, %v757
    %v759 = vshrl.u32 683565275, %v758
    %v760 = vshll.u32 683565275, %v757
    %v761 = vshrl.u32 2475754826, %v758
    %v762 = vor.u32 %v760, %v761
    %v763 = vshll.u32 2475754826, %v757
    %v764 = vshrl.u32 2131351028, %v758
    %v765 = vor.u32 %v763, %v764
    %v766 = vshll.u32 2131351028, %v757
    %v767 = vshrl.u32 2102212464, %v758
    %v768 = vor.u32 %v766, %v767
    %v769 = vshll.u32 2102212464, %v757
    %v770 = vshrl.u32 920167782, %v758
    %v771 = vor.u32 %v769, %v770
    %v772 = vshll.u32 920167782, %v757
    %v773 = vshrl.u32 1326507024, %v758
    %v774 = vor.u32 %v772, %v773
    %vm775 = vcmp.lt.s32.totalorder %v756, 1
    %vm776 = vcmp.lt.s32.totalorder %v756, 2
    %vm777 = vcmp.lt.s32.totalorder %v756, 3
    %vm778 = vcmp.lt.s32.totalorder %v756, 4
    %v779 = vsel %vm775, %v759, %v762
    %v780 = vsel %vm778, %v768, 2102212464
    %v781 = vsel %vm777, %v765, %v780
    %v782 = vsel %vm776, %v779, %v781
    %v783 = vsel %vm775, %v762, %v765
    %v784 = vsel %vm778, %v771, 920167782
    %v785 = vsel %vm777, %v768, %v784
    %v786 = vsel %vm776, %v783, %v785
    %v787 = vsel %vm775, %v765, %v768
    %v788 = vsel %vm778, %v774, 1326507024
    %v789 = vsel %vm777, %v771, %v788
    %v790 = vsel %vm776, %v787, %v789
    %v791 = vshll.u32 %v751, 8
    %v792 = vmul.u32.u64.compose %v791, %v790
    %v793 = vextract.low.u32 %v792
    %v794 = vextract.high.u32 %v792
    %v795 = vmul.u32.u64.compose %v791, %v786
    %v796 = vextract.low.u32 %v795
    %v797 = vextract.high.u32 %v795
    %v798 = vmul.u32 %v791, %v782
    %v799 = vadd.s32 %v794, %v796
    %vm800 = vc.u32 %v794, %v796
    %v801 = vadd.s32 %v797, 1
    %v802 = vsel %vm800, %v801, %v797
    %v803 = vadd.s32 %v798, %v802
    %v804 = vadd.s32 %v803, 536870912
    %v805 = vshrl.u32 %v804, 30
    %v806 = vshll.u32 %v805, 30
    %v807 = vsub.s32 %v803, %v806
    %vm808 = vcmp.lt.s32.totalorder %v807, 0
    %v809 = vsub.s32 0, %v807
    %v810 = vsel %vm808, %v809, %v807
    %v811 = vclz %v810
    %v812 = vsub.s32 %v811, 2
    %vm813 = vcmp.gt.s32.totalorder 0, %v812
    %v814 = vsel %vm813, 0, %v812
    %v815 = vsub.s32 32, %v814
    %v816 = vshll.u32 %v807, %v814
    %v817 = vshrl.u32 %v799, %v815
    %v818 = vor.u32 %v816, %v817
    %v819 = vsub.s32 4294967266, %v814
    %v820 = vadd.s32 %v819, 127
    %v821 = vshll.u32 %v820, 23
    %v822 = vor.u32 4788187, %v821
    %v823 = vand.u32 2147483647, %v822
    %v825 = vcvt.s32.f32 %v818
    %v826 = vmul.f32 %v825, %v823
    %v827 = vxor.u32 %v826, 2147483648
    %v828 = vsel %vm745, %v827, %v826
    %v829 = vsub.s32 4, %v805
    %v830 = vsel %vm745, %v829, %v805
    %v831 = vsel %vm744, %v123, %v828
    %v832 = vsel %vm744, 0, %v830
    %v833 = vcosq.f32.pop %v831
    %v834 = vsinq.f32.pop %v831
    %vm835 = vweird.f32 %v123
    %v836 = vand.u32 %v832, 3
    %vm837 = vcmp.lt.s32.totalorder %v836, 2
    %vm838 = vcmp.eq.s32.totalorder %v836, 0
    %v839 = vxor.u32 %v834, 2147483648
    %v840 = vsel %vm838, %v833, %v839
    %vm841 = vcmp.eq.s32.totalorder %v836, 2
    %v842 = vxor.u32 %v833, 2147483648
    %v843 = vsel %vm841, %v842, %v834
    %v844 = vsel %vm837, %v840, %v843
    %v845 = vsel %vm835, nan, %v844
    %v846 = vand.u32 2147483647, %v124
    %vm847 = vcmp.le.f32.partialorder %v846, 0.7853982
    %vm848 = vcmp.lt.s32.totalorder %v124, 0
    %v849 = vand.u32 %v124, 2139095040
    %v850 = vshrl.u32 %v849, 23
    %v851 = vsub.s32 %v850, 127
    %v852 = vand.u32 2147483647, %v124
    %v853 = vand.u32 %v852, 8388607
    %v854 = vor.u32 %v853, 8388608
    %v855 = vsub.s32 0, %v854
    %v856 = vadd.s32 %v851, 1
    %vm857 = vcmp.gt.s32.totalorder %v856, 0
    %v858 = vsel %vm857, %v856, 0
    %v859 = vshrl.u32 %v858, 5
    %v860 = vand.u32 %v858, 31
    %v861 = vsub.s32 32, %v860
    %v862 = vshrl.u32 683565275, %v861
    %v863 = vshll.u32 683565275, %v860
    %v864 = vshrl.u32 2475754826, %v861
    %v865 = vor.u32 %v863, %v864
    %v866 = vshll.u32 2475754826, %v860
    %v867 = vshrl.u32 2131351028, %v861
    %v868 = vor.u32 %v866, %v867
    %v869 = vshll.u32 2131351028, %v860
    %v870 = vshrl.u32 2102212464, %v861
    %v871 = vor.u32 %v869, %v870
    %v872 = vshll.u32 2102212464, %v860
    %v873 = vshrl.u32 920167782, %v861
    %v874 = vor.u32 %v872, %v873
    %v875 = vshll.u32 920167782, %v860
    %v876 = vshrl.u32 1326507024, %v861
    %v877 = vor.u32 %v875, %v876
    %vm878 = vcmp.lt.s32.totalorder %v859, 1
    %vm879 = vcmp.lt.s32.totalorder %v859, 2
    %vm880 = vcmp.lt.s32.totalorder %v859, 3
    %vm881 = vcmp.lt.s32.totalorder %v859, 4
    %v882 = vsel %vm878, %v862, %v865
    %v883 = vsel %vm881, %v871, 2102212464
    %v884 = vsel %vm880, %v868, %v883
    %v885 = vsel %vm879, %v882, %v884
    %v886 = vsel %vm878, %v865, %v868
    %v887 = vsel %vm881, %v874, 920167782
    %v888 = vsel %vm880, %v871, %v887
    %v889 = vsel %vm879, %v886, %v888
    %v890 = vsel %vm878, %v868, %v871
    %v891 = vsel %vm881, %v877, 1326507024
    %v892 = vsel %vm880, %v874, %v891
    %v893 = vsel %vm879, %v890, %v892
    %v894 = vshll.u32 %v854, 8
    %v895 = vmul.u32.u64.compose %v894, %v893
    %v896 = vextract.low.u32 %v895
    %v897 = vextract.high.u32 %v895
    %v898 = vmul.u32.u64.compose %v894, %v889
    %v899 = vextract.low.u32 %v898
    %v900 = vextract.high.u32 %v898
    %v901 = vmul.u32 %v894, %v885
    %v902 = vadd.s32 %v897, %v899
    %vm903 = vc.u32 %v897, %v899
    %v904 = vadd.s32 %v900, 1
    %v905 = vsel %vm903, %v904, %v900
    %v906 = vadd.s32 %v901, %v905
    %v907 = vadd.s32 %v906, 536870912
    %v908 = vshrl.u32 %v907, 30
    %v909 = vshll.u32 %v908, 30
    %v910 = vsub.s32 %v906, %v909
    %vm911 = vcmp.lt.s32.totalorder %v910, 0
    %v912 = vsub.s32 0, %v910
    %v913 = vsel %vm911, %v912, %v910
    %v914 = vclz %v913
    %v915 = vsub.s32 %v914, 2
    %vm916 = vcmp.gt.s32.totalorder 0, %v915
    %v917 = vsel %vm916, 0, %v915
    %v918 = vsub.s32 32, %v917
    %v919 = vshll.u32 %v910, %v917
    %v920 = vshrl.u32 %v902, %v918
    %v921 = vor.u32 %v919, %v920
    %v922 = vsub.s32 4294967266, %v917
    %v923 = vadd.s32 %v922, 127
    %v924 = vshll.u32 %v923, 23
    %v925 = vor.u32 4788187, %v924
    %v926 = vand.u32 2147483647, %v925
    %v928 = vcvt.s32.f32 %v921
    %v929 = vmul.f32 %v928, %v926
    %v930 = vxor.u32 %v929, 2147483648
    %v931 = vsel %vm848, %v930, %v929
    %v932 = vsub.s32 4, %v908
    %v933 = vsel %vm848, %v932, %v908
    %v934 = vsel %vm847, %v124, %v931
    %v935 = vsel %vm847, 0, %v933
    %v936 = vcosq.f32.pop %v934
    %v937 = vsinq.f32.pop %v934
    %vm938 = vweird.f32 %v124
    %v939 = vand.u32 %v935, 3
    %vm940 = vcmp.lt.s32.totalorder %v939, 2
    %vm941 = vcmp.eq.s32.totalorder %v939, 0
    %v942 = vxor.u32 %v937, 2147483648
    %v943 = vsel %vm941, %v936, %v942
    %vm944 = vcmp.eq.s32.totalorder %v939, 2
    %v945 = vxor.u32 %v936, 2147483648
    %v946 = vsel %vm944, %v945, %v937
    %v947 = vsel %vm940, %v943, %v946
    %v948 = vsel %vm938, nan, %v947
    %949 = vst [vmem:[#allocation8] sm:$0xff] %v227
    %950 = vst [vmem:[#allocation8 + $0x8] sm:$0xff] %v330
    %951 = vst [vmem:[#allocation8 + $0x10] sm:$0xff] %v433
    %952 = vst [vmem:[#allocation8 + $0x18] sm:$0xff] %v536
    %953 = vst [vmem:[#allocation8 + $0x20] sm:$0xff] %v639
    %954 = vst [vmem:[#allocation8 + $0x28] sm:$0xff] %v742
    %955 = vst [vmem:[#allocation8 + $0x30] sm:$0xff] %v845
    %956 = vst [vmem:[#allocation8 + $0x38] sm:$0xff] %v948
    // Predicated region
    $region26: #{tpu_custom_call.1} parent=1 // pred_check
      _
    $region27: #{tpu_custom_call.1} parent=1 // pred_check_branch
      %958 = sbr.rel (0) target = $region29
    $region28: #{tpu_custom_call.1} parent=1 // pred_region
      %s960 = ssub.s32 1024, 1024
      %961 = vsyncadd [#allocation4], %s960
      %s962 = sshll.u32 [#allocation8], 4
      %s963 = int_to_ptr.vmem [resolvable:$true] %s962
      %968 = dma.vmem_to_hbm [thread:$0]  %s963, 1024, %s3, [#allocation4], 128, 128, 8
    $region29: #{tpu_custom_call.1} parent=1 // pred_fallthru
      _
    // Predicated region
    $region30: #{tpu_custom_call.1} parent=1 // pred_check
      _
    $region31: #{tpu_custom_call.1} parent=1 // pred_check_branch
      %970 = sbr.rel (0) target = $region33
    $region32: #{tpu_custom_call.1} parent=1 // pred_region
      %971 = dma.done [#allocation4], 1024
    $region33: #{tpu_custom_call.1} parent=1 // pred_fallthru
      _
    %972 = vsyncpa [#allocation3], 1
    %973 = vsyncpa [#allocation6], 1
    %974 = vsyncpa [#allocation4], 1

</llo_original>
